<compile_context>
chip_gen: v5e
topology: v5e:2x2
jax: 0.10.0
libtpu: 0.0.40
codegen_flags: <defaults>
</compile_context>

<pallas_src>
import jax
import jax.numpy as jnp
from jax.experimental import pallas as pl
from jax.experimental.pallas import tpu as pltpu

LN_EPS = 1e-12                      # config.layer_norm_eps (BERT/Longformer default)
_GELU_C1 = 1.5957691216057308       # 2 * sqrt(2/pi)
_GELU_C2 = 0.07135752659389189      # 2 * 0.044715 * sqrt(2/pi)


def _round_up(n, m):
    return ((n + m - 1) // m) * m


def _bias_gelu_ln(h, b, g, beta, out_dim_true, out_dim_pad):
    """bias add + gelu_new + LayerNorm on an f32 (tm, out_dim_pad) tile."""
    h = h + b
    # gelu_new via tanh->sigmoid identity:
    #   0.5*x*(1+tanh(a)) == x*sigmoid(2a),  a = sqrt(2/pi)*(x + 0.044715*x^3)
    h = h * jax.nn.sigmoid(h * (_GELU_C1 + _GELU_C2 * h * h))

    # LayerNorm over the true output_dim. Padded columns of h are exactly zero
    # (zero weight cols + zero bias, gelu(0)=0), so row sums over the padded
    # width equal sums over the true width; only the centered term needs a
    # mask before the variance.
    inv_d = 1.0 / float(out_dim_true)
    mean = jnp.sum(h, axis=-1, keepdims=True) * inv_d
    centered = h - mean
    if out_dim_pad != out_dim_true:
        col = jax.lax.broadcasted_iota(jnp.int32, (1, out_dim_pad), 1)
        centered = jnp.where(col < out_dim_true, centered, 0.0)
    var = jnp.sum(centered * centered, axis=-1, keepdims=True) * inv_d
    hn = centered * jax.lax.rsqrt(var + LN_EPS)
    return hn * g + beta


def _make_single_kernel(out_dim_true, out_dim_pad, cast_bf16):
    """Weight fully resident in VMEM; 1-D row grid."""
    def kernel(x_ref, w_ref, b_ref, g_ref, beta_ref, o_ref):
        x = x_ref[...]
        w = w_ref[...]
        if cast_bf16:
            x = x.astype(jnp.bfloat16)
            w = w.astype(jnp.bfloat16)
        h = jnp.dot(x, w, preferred_element_type=jnp.float32)
        out = _bias_gelu_ln(h, b_ref[...], g_ref[...], beta_ref[...],
                            out_dim_true, out_dim_pad)
        # Dropout: eval mode -> identity.
        # TODO(synk): training-mode dropout would use pltpu.prng_seed/prng_random_bits.
        o_ref[...] = out.astype(o_ref.dtype)

    return kernel


def _make_ktiled_kernel(out_dim_true, out_dim_pad, cast_bf16):
    """Weight streamed in (tk, out_dim_pad) slabs; f32 accumulator scratch."""
    def kernel(x_ref, w_ref, b_ref, g_ref, beta_ref, o_ref, acc_ref):
        k = pl.program_id(1)

        @pl.when(k == 0)
        def _():
            acc_ref[...] = jnp.zeros_like(acc_ref)

        x = x_ref[...]
        w = w_ref[...]
        if cast_bf16:
            x = x.astype(jnp.bfloat16)
            w = w.astype(jnp.bfloat16)
        acc_ref[...] += jnp.dot(x, w, preferred_element_type=jnp.float32)

        @pl.when(k == pl.num_programs(1) - 1)
        def _():
            out = _bias_gelu_ln(acc_ref[...], b_ref[...], g_ref[...],
                                beta_ref[...], out_dim_true, out_dim_pad)
            o_ref[...] = out.astype(o_ref.dtype)

    return kernel


def _vmem_budget_bytes():
    cap = 64 << 20  # conservative fallback (v7x per-TC VMEM)
    try:
        cap = int(pltpu.get_tpu_info().vmem_capacity_bytes)
    except Exception:
        pass
    return int(cap * 0.85), cap


def fully_connected_layer(x, weight, bias, gamma, beta, *, tm=None,
                          matmul_in_bf16=False):
    """Fused Linear + gelu_new + LayerNorm (+ eval-mode dropout).

    x: [..., input_dim]; weight: [input_dim, output_dim] (transpose of the
    PyTorch nn.Linear.weight layout!); bias/gamma/beta: [output_dim].
    matmul_in_bf16: optionally cast f32 matmul operands to bf16 (f32 accum
    kept) -- a precision/speed tradeoff mainly for v5e.
    """
    in_dim = x.shape[-1]
    out_dim = weight.shape[-1]
    lead_shape = x.shape[:-1]

    x2d = x.reshape(-1, in_dim)
    m = x2d.shape[0]

    x_bytes = jnp.dtype(x.dtype).itemsize
    w_bytes = jnp.dtype(weight.dtype).itemsize
    cast_bf16 = bool(matmul_in_bf16) and x.dtype == jnp.float32

    budget, vmem_cap = _vmem_budget_bytes()

    # --- row tile: sublane-packed for the activation dtype, large enough to
    # feed the MXU, and split into >=2 blocks when possible so the "parallel"
    # row axis shards across both TensorCores on v7x.
    sub = max(8, 32 // x_bytes)                    # 8 (f32) / 16 (bf16) / 32 (int8)
    if tm is None:
        tm_target = 512 if budget >= (100 << 20) else 256
    else:
        tm_target = max(sub, _round_up(int(tm), sub))
    if m > sub:
        tm_eff = min(tm_target, _round_up(-(-m // 2), sub))
    else:
        tm_eff = _round_up(max(m, 1), sub)
    tm_eff = max(tm_eff, sub)

    # --- lane-dense feature padding (only when needed).
    in_dim_p = _round_up(in_dim, 128)
    out_dim_p = _round_up(out_dim, 128)

    # --- resident-weight (single-pass) VMEM estimate.  Weight / bias / gamma /
    # beta use Buffered(1), so a single copy is resident; x/out tiles are
    # double-buffered; the trailing term covers Mosaic-materialized f32
    # intermediates of the elementwise chain.
    def resident_est(tm_):
        return (in_dim_p * out_dim_p * w_bytes
                + 2 * tm_ * in_dim_p * x_bytes
                + 2 * tm_ * out_dim_p * x_bytes
                + 3 * out_dim_p * 4
                + 4 * tm_ * out_dim_p * 4)

    def ktiled_est(tm_, tk_):
        return (2 * tk_ * out_dim_p * w_bytes          # streamed weight slabs
                + 2 * tm_ * tk_ * x_bytes              # x tiles
                + 2 * tm_ * out_dim_p * x_bytes        # out tiles
                + tm_ * out_dim_p * 4                  # f32 accumulator scratch
                + 3 * out_dim_p * 4
                + 2 * tm_ * out_dim_p * 4)

    k_tiled = resident_est(tm_eff) > budget
    if k_tiled:
        tk = min(in_dim_p, 2048)
        while tk > 128 and ktiled_est(tm_eff, tk) > budget:
            tk -= 128
        while ktiled_est(tm_eff, tk) > budget and tm_eff > sub:
            tm_eff = max(sub, _round_up(tm_eff // 2, sub))
        in_dim_p = _round_up(in_dim, tk)               # tk must divide padded K
        grid_k = in_dim_p // tk
        vmem_est = ktiled_est(tm_eff, tk)
    else:
        tk = in_dim_p
        grid_k = 1
        vmem_est = resident_est(tm_eff)

    vmem_limit = int(min(budget, max(int(vmem_est * 1.25) + (2 << 20), 16 << 20)))
    vmem_limit = min(vmem_limit, vmem_cap)

    # --- conditional padding (each pad is a full HBM pass; skip when aligned).
    x_p = x2d if in_dim_p == in_dim else jnp.pad(x2d, ((0, 0), (0, in_dim_p - in_dim)))
    if (in_dim_p == in_dim) and (out_dim_p == out_dim):
        w_p = weight
    else:
        w_p = jnp.pad(weight, ((0, in_dim_p - in_dim), (0, out_dim_p - out_dim)))

    def _prep_row(v):
        v = v.astype(jnp.float32)
        if out_dim_p != out_dim:
            v = jnp.pad(v, (0, out_dim_p - out_dim))
        return v.reshape(1, out_dim_p)

    b_p, g_p, beta_p = _prep_row(bias), _prep_row(gamma), _prep_row(beta)

    grid_m = pl.cdiv(m, tm_eff)          # no M padding: last block's store is masked

    cost = pl.CostEstimate(
        flops=2 * m * in_dim * out_dim,
        transcendentals=m * out_dim,
        bytes_accessed=(m * in_dim * x_bytes
                        + in_dim * out_dim * w_bytes
                        + m * out_dim * x_bytes),
    )

    resident = pl.Buffered(1)            # constant index_map -> single resident copy

    if not k_tiled:
        kernel = _make_single_kernel(out_dim, out_dim_p, cast_bf16)
        grid = (grid_m,)
        in_specs = [
            pl.BlockSpec((tm_eff, in_dim_p), lambda i: (i, 0)),
            pl.BlockSpec((in_dim_p, out_dim_p), lambda i: (0, 0), pipeline_mode=resident),
            pl.BlockSpec((1, out_dim_p), lambda i: (0, 0), pipeline_mode=resident),
            pl.BlockSpec((1, out_dim_p), lambda i: (0, 0), pipeline_mode=resident),
            pl.BlockSpec((1, out_dim_p), lambda i: (0, 0), pipeline_mode=resident),
        ]
        out_specs = pl.BlockSpec((tm_eff, out_dim_p), lambda i: (i, 0))
        scratch_shapes = []
        dim_sem = ("parallel",)
    else:
        kernel = _make_ktiled_kernel(out_dim, out_dim_p, cast_bf16)
        grid = (grid_m, grid_k)
        in_specs = [
            pl.BlockSpec((tm_eff, tk), lambda i, k: (i, k)),
            pl.BlockSpec((tk, out_dim_p), lambda i, k: (k, 0)),
            pl.BlockSpec((1, out_dim_p), lambda i, k: (0, 0), pipeline_mode=resident),
            pl.BlockSpec((1, out_dim_p), lambda i, k: (0, 0), pipeline_mode=resident),
            pl.BlockSpec((1, out_dim_p), lambda i, k: (0, 0), pipeline_mode=resident),
        ]
        out_specs = pl.BlockSpec((tm_eff, out_dim_p), lambda i, k: (i, 0))
        scratch_shapes = [pltpu.VMEM((tm_eff, out_dim_p), jnp.float32)]
        dim_sem = ("parallel", "arbitrary")

    out = pl.pallas_call(
        kernel,
        out_shape=jax.ShapeDtypeStruct((m, out_dim_p), x.dtype),
        grid_spec=pltpu.PrefetchScalarGridSpec(
            num_scalar_prefetch=0,
            grid=grid,
            in_specs=in_specs,
            out_specs=out_specs,
            scratch_shapes=scratch_shapes,
        ),
        compiler_params=pltpu.CompilerParams(
            dimension_semantics=dim_sem,
            vmem_limit_bytes=vmem_limit,
        ),
        cost_estimate=cost,
    )(x_p, w_p, b_p, g_p, beta_p)

    if out_dim_p != out_dim:
        out = out[:, :out_dim]
    return out.reshape(*lead_shape, out_dim)


def _reference(x, weight, bias, gamma, beta):
    h = jnp.einsum("...i,io->...o", x, weight) + bias
    h = 0.5 * h * (1.0 + jnp.tanh(0.7978845608028654 * (h + 0.044715 * h ** 3)))
    mean = jnp.mean(h, axis=-1, keepdims=True)
    var = jnp.mean((h - mean) ** 2, axis=-1, keepdims=True)
    hn = (h - mean) * jax.lax.rsqrt(var + LN_EPS)
    return hn * gamma + beta


if __name__ == "__main__":
    key = jax.random.PRNGKey(0)
    batch, seq, input_dim, output_dim = 2, 8, 32, 32

    k_x, k_w, k_b, k_g, k_beta = jax.random.split(key, 5)
    x = jax.random.normal(k_x, (batch, seq, input_dim), dtype=jnp.float32)
    # Linear params (deterministic synthetic init); stored as [in, out]
    # (transpose of PyTorch nn.Linear.weight).
    weight = jax.random.normal(k_w, (input_dim, output_dim), dtype=jnp.float32) * 0.05
    bias = jax.random.normal(k_b, (output_dim,), dtype=jnp.float32) * 0.01
    gamma = jnp.ones((output_dim,), dtype=jnp.float32) + 0.1 * jax.random.normal(
        k_g, (output_dim,), dtype=jnp.float32
    )
    beta = 0.1 * jax.random.normal(k_beta, (output_dim,), dtype=jnp.float32)

    out = fully_connected_layer(x, weight, bias, gamma, beta)
    out = jax.block_until_ready(out)

    ref = _reference(x, weight, bias, gamma, beta)
    assert out.shape == (batch, seq, output_dim)
    assert jnp.allclose(out, ref, atol=1e-4, rtol=1e-4), "mismatch vs reference"

    print("KERNEL_OK")
</pallas_src>

<mosaic_0001>
module attributes {stable_mosaic.version = 11 : i64} {
  func.func @kernel(%arg0: i32, %arg1: memref<8x128xf32, #tpu.memory_space<vmem>>, %arg2: memref<128x128xf32, #tpu.memory_space<vmem>>, %arg3: memref<1x128xf32, #tpu.memory_space<vmem>>, %arg4: memref<1x128xf32, #tpu.memory_space<vmem>>, %arg5: memref<1x128xf32, #tpu.memory_space<vmem>>, %arg6: memref<8x128xf32, #tpu.memory_space<vmem>>) attributes {dimension_semantics = [#tpu.dimension_semantics<parallel>], iteration_bounds = array<i64: 2>, scalar_prefetch = 0 : i64, scratch_operands = 0 : i64, tpu.core_type = #tpu.core_type<tc>, window_params = [{transform_indices = @transform_0, window_bounds = array<i64: 8, 128>}, {pipeline_mode = #tpu.pipeline_mode<synchronous>, transform_indices = @transform_1, window_bounds = array<i64: 128, 128>}, {pipeline_mode = #tpu.pipeline_mode<synchronous>, transform_indices = @transform_2, window_bounds = array<i64: 1, 128>}, {pipeline_mode = #tpu.pipeline_mode<synchronous>, transform_indices = @transform_3, window_bounds = array<i64: 1, 128>}, {pipeline_mode = #tpu.pipeline_mode<synchronous>, transform_indices = @transform_4, window_bounds = array<i64: 1, 128>}, {transform_indices = @transform_5, window_bounds = array<i64: 8, 128>}]} {
    %c0 = arith.constant 0 : index
    %c0_0 = arith.constant 0 : index
    %0 = vector.load %arg1[%c0, %c0_0] : memref<8x128xf32, #tpu.memory_space<vmem>>, vector<8x128xf32>
    %c0_1 = arith.constant 0 : index
    %c0_2 = arith.constant 0 : index
    %1 = vector.load %arg2[%c0_1, %c0_2] : memref<128x128xf32, #tpu.memory_space<vmem>>, vector<128x128xf32>
    %cst = arith.constant dense<0.000000e+00> : vector<8x128xf32>
    %2 = tpu.matmul %0, %1, %cst {dimension_numbers = #tpu.dot_dimension_numbers<[1], [0], [0], [1], [0, 0, 1, 1], [], []>} : vector<8x128xf32>, vector<128x128xf32>, vector<8x128xf32> -> vector<8x128xf32>
    %c0_3 = arith.constant 0 : index
    %c0_4 = arith.constant 0 : index
    %3 = vector.load %arg3[%c0_3, %c0_4] : memref<1x128xf32, #tpu.memory_space<vmem>>, vector<1x128xf32>
    %c0_5 = arith.constant 0 : index
    %c0_6 = arith.constant 0 : index
    %4 = vector.load %arg4[%c0_5, %c0_6] : memref<1x128xf32, #tpu.memory_space<vmem>>, vector<1x128xf32>
    %c0_7 = arith.constant 0 : index
    %c0_8 = arith.constant 0 : index
    %5 = vector.load %arg5[%c0_7, %c0_8] : memref<1x128xf32, #tpu.memory_space<vmem>>, vector<1x128xf32>
    %6 = vector.broadcast %3 : vector<1x128xf32> to vector<8x128xf32>
    %7 = arith.addf %2, %6 : vector<8x128xf32>
    %cst_9 = arith.constant 0.0713575259 : f32
    %8 = vector.broadcast %cst_9 : f32 to vector<8x128xf32>
    %9 = arith.mulf %8, %7 : vector<8x128xf32>
    %10 = arith.mulf %9, %7 : vector<8x128xf32>
    %cst_10 = arith.constant 1.59576917 : f32
    %11 = vector.broadcast %cst_10 : f32 to vector<8x128xf32>
    %12 = arith.addf %11, %10 : vector<8x128xf32>
    %13 = arith.mulf %7, %12 : vector<8x128xf32>
    %14 = arith.negf %13 : vector<8x128xf32>
    %15 = math.exp %14 : vector<8x128xf32>
    %cst_11 = arith.constant 1.000000e+00 : f32
    %16 = vector.broadcast %cst_11 : f32 to vector<8x128xf32>
    %17 = arith.addf %16, %15 : vector<8x128xf32>
    %18 = arith.divf %16, %17 : vector<8x128xf32>
    %19 = arith.mulf %7, %18 : vector<8x128xf32>
    %cst_12 = arith.constant dense<0.000000e+00> : vector<8xf32>
    %20 = vector.multi_reduction <add>, %19, %cst_12 [1] : vector<8x128xf32> to vector<8xf32>
    %21 = vector.shape_cast %20 : vector<8xf32> to vector<8x1xf32>
    %cst_13 = arith.constant 3.125000e-02 : f32
    %22 = vector.broadcast %cst_13 : f32 to vector<8x1xf32>
    %23 = arith.mulf %21, %22 : vector<8x1xf32>
    %24 = vector.broadcast %23 : vector<8x1xf32> to vector<8x128xf32>
    %25 = arith.subf %19, %24 : vector<8x128xf32>
    %26 = tpu.iota {dimensions = array<i32: 1>} : vector<1x128xi32>
    %c32_i32 = arith.constant 32 : i32
    %27 = vector.broadcast %c32_i32 : i32 to vector<1x128xi32>
    %28 = arith.cmpi slt, %26, %27 : vector<1x128xi32>
    %cst_14 = arith.constant 0.000000e+00 : f32
    %29 = vector.shape_cast %28 : vector<1x128xi1> to vector<1x128xi1>
    %30 = vector.broadcast %29 : vector<1x128xi1> to vector<8x128xi1>
    %31 = vector.broadcast %cst_14 : f32 to vector<8x128xf32>
    %32 = arith.select %30, %25, %31 : vector<8x128xi1>, vector<8x128xf32>
    %33 = arith.mulf %32, %32 : vector<8x128xf32>
    %cst_15 = arith.constant dense<0.000000e+00> : vector<8xf32>
    %34 = vector.multi_reduction <add>, %33, %cst_15 [1] : vector<8x128xf32> to vector<8xf32>
    %35 = vector.shape_cast %34 : vector<8xf32> to vector<8x1xf32>
    %cst_16 = arith.constant 3.125000e-02 : f32
    %36 = vector.broadcast %cst_16 : f32 to vector<8x1xf32>
    %37 = arith.mulf %35, %36 : vector<8x1xf32>
    %cst_17 = arith.constant 9.99999996E-13 : f32
    %38 = vector.broadcast %cst_17 : f32 to vector<8x1xf32>
    %39 = arith.addf %37, %38 : vector<8x1xf32>
    %40 = math.rsqrt %39 : vector<8x1xf32>
    %41 = vector.broadcast %40 : vector<8x1xf32> to vector<8x128xf32>
    %42 = arith.mulf %32, %41 : vector<8x128xf32>
    %43 = vector.broadcast %4 : vector<1x128xf32> to vector<8x128xf32>
    %44 = arith.mulf %42, %43 : vector<8x128xf32>
    %45 = vector.broadcast %5 : vector<1x128xf32> to vector<8x128xf32>
    %46 = arith.addf %44, %45 : vector<8x128xf32>
    %c0_18 = arith.constant 0 : index
    %c0_19 = arith.constant 0 : index
    %47 = vector.load %arg6[%c0_18, %c0_19] : memref<8x128xf32, #tpu.memory_space<vmem>>, vector<8x128xf32>
    tpu.vector_store %arg6[%c0_18, %c0_19], %46 {strides = array<i32>} : memref<8x128xf32, #tpu.memory_space<vmem>>, vector<8x128xf32>,
    return
  }
  func.func @transform_0(%arg0: i32) -> (i32, i32) {
    %c0_i32 = arith.constant 0 : i32
    %c0_i32_0 = arith.constant 0 : i32
    return %arg0, %c0_i32 : i32, i32
  }
  func.func @transform_1(%arg0: i32) -> (i32, i32) {
    %c0_i32 = arith.constant 0 : i32
    %c0_i32_0 = arith.constant 0 : i32
    %c0_i32_1 = arith.constant 0 : i32
    return %c0_i32, %c0_i32_0 : i32, i32
  }
  func.func @transform_2(%arg0: i32) -> (i32, i32) {
    %c0_i32 = arith.constant 0 : i32
    %c0_i32_0 = arith.constant 0 : i32
    %c0_i32_1 = arith.constant 0 : i32
    return %c0_i32, %c0_i32_0 : i32, i32
  }
  func.func @transform_3(%arg0: i32) -> (i32, i32) {
    %c0_i32 = arith.constant 0 : i32
    %c0_i32_0 = arith.constant 0 : i32
    %c0_i32_1 = arith.constant 0 : i32
    return %c0_i32, %c0_i32_0 : i32, i32
  }
  func.func @transform_4(%arg0: i32) -> (i32, i32) {
    %c0_i32 = arith.constant 0 : i32
    %c0_i32_0 = arith.constant 0 : i32
    %c0_i32_1 = arith.constant 0 : i32
    return %c0_i32, %c0_i32_0 : i32, i32
  }
  func.func @transform_5(%arg0: i32) -> (i32, i32) {
    %c0_i32 = arith.constant 0 : i32
    %c0_i32_0 = arith.constant 0 : i32
    return %arg0, %c0_i32 : i32, i32
  }
}

</mosaic_0001>

<llo_original>
// kernel: tpu_custom_call.1
$region0: #{tpu_custom_call.1}
  #allocation0 [shape = 'u32[]', space=smem, size = 0x4, offset = 0x4, fixed_abs, tag = 'smem constant byte address 0x4 - core index']
  #allocation1 [shape = 'u32[72,128]{1,0:T(1,128)}', space=vmem, size = 0x9000, scoped, tag = 'internal scratch']
  %s0 = inlined_call_operand.hbm [shape: f32[16,128], index: 0, kind: input, shape index: {}]
  %s1 = inlined_call_operand.hbm [shape: f32[128,128], index: 1, kind: input, shape index: {}]
  %s2 = inlined_call_operand.vmem [shape: f32[1,128], index: 2, kind: input, shape index: {}]
  %s3 = inlined_call_operand.vmem [shape: f32[1,128], index: 3, kind: input, shape index: {}]
  %s4 = inlined_call_operand.vmem [shape: f32[1,128], index: 4, kind: input, shape index: {}]
  %s5 = inlined_call_operand.hbm [shape: f32[16,128], index: 5, kind: output, shape index: {}]
  %s6 = sld [smem:[#allocation0]]
  $region61: #{tpu_custom_call.1} parent=0
    _
  %s8 = ssub.s32 1, %s6
  %s9 = scalar_select 0, %s8, %s6
  $region1: #{tpu_custom_call.1} parent=0
    #allocation2 [shape = 'u8[8192]{0}', space=vmem, size = 0x2000, scoped, tag = 'input window, operand 0']
    #allocation3 [shape = 's32[2]{0}', space=sflag, size = 0x8, scoped, tag = 'scoped memory for tpu_custom_call.1']
    #allocation4 [shape = 's32[2]{0}', space=sflag, size = 0x8, scoped, tag = 'scoped memory for tpu_custom_call.1']
    #allocation5 [shape = 'u8[65536]{0}', space=vmem, size = 0x10000, scoped, tag = 'input window, operand 1, single buffered']
    #allocation6 [shape = 's32[1]{0}', space=sflag, size = 0x4, scoped, tag = 'scoped memory for tpu_custom_call.1']
    #allocation7 [shape = 'u8[8192]{0}', space=vmem, size = 0x2000, scoped, tag = 'output window, operand 0']
    %10 = vsyncpa [#allocation3], 0
    %s11 = scalar_lea.sflag [#allocation3], 1
    %12 = vsyncpa %s11, 0
    %13 = vsyncpa [#allocation6], 0
    %14 = vsyncpa [#allocation4], 0
    %s15 = scalar_lea.sflag [#allocation4], 1
    %16 = vsyncpa %s15, 0
    loop: start=0, step=1, limit=4
    $region2: #{tpu_custom_call.1} parent=1 // loop_pre_header
      _
    $region3: #{tpu_custom_call.1} parent=1 // loop_header
      %s18 = sphi 0, %s22
      %p19 = scmp.ge.s32.totalorder %s18, 4
      %s28 = sphi 0, %s30
      %s31 = sphi 0, %s28
      %s32 = sphi 0, %s31
      %s48 = sphi 0, %s32
      %s52 = sphi 0, %s52
      %s54 = sphi 0, %s52
      %s55 = sphi 0, %s54
      %s69 = sphi 0, %s55
      %s73 = sphi 0, %s73
      %s75 = sphi 0, %s73
      %s76 = sphi 0, %s75
      %s90 = sphi 0, %s76
      %s94 = sphi 0, %s94
      %s96 = sphi 0, %s94
      %s97 = sphi 0, %s96
      %s111 = sphi 0, %s97
      %s115 = sphi 0, %s115
      %s117 = sphi 0, %s115
      %s118 = sphi 0, %s117
      %s132 = sphi 0, %s118
      %s138 = sphi 0, %s140
      %s141 = sphi 0, %s138
      %s142 = sphi 0, %s141
      %s158 = sphi 0, %s142
    $region4: #{tpu_custom_call.1} parent=1 // loop_header_branch
      %21 = sbr.rel (%p19) target = $region8
    $region5: #{tpu_custom_call.1} parent=1 // loop_body
      %s23 = ssub.s32 %s18, 1
      %s24 = ssub.s32 %s18, 2
      %s25 = sadd.s32 %s18, 1
      %s26 = ssub.s32 %s18, %s25
      %p27 = scmp.eq.s32.totalorder %s26, 0
      %s29 = sadd.s32 %s28, 1
      %s30 = scalar_select %p27, %s28, %s29
      %p33 = pneg %p27
      %p34 = scmp.eq.s32.totalorder %s18, 1
      %p35 = por %p33, %p34
      %p36 = scmp.ne.s32.totalorder %s28, %s31
      %p37 = scmp.eq.s32.totalorder %s18, 0
      %p38 = por %p36, %p37
      %p39 = scmp.ne.s32.totalorder %s28, %s31
      %p40 = scmp.eq.s32.totalorder %s23, 1
      %p41 = por %p39, %p40
      %p42 = scmp.ne.s32.totalorder %s31, %s32
      %p43 = scmp.eq.s32.totalorder %s23, 0
      %p44 = por %p42, %p43
      %p45 = scmp.ne.s32.totalorder %s31, %s32
      %p46 = scmp.eq.s32.totalorder %s24, 1
      %p47 = por %p45, %p46
      %p49 = scmp.ne.s32.totalorder %s32, %s48
      %p50 = scmp.eq.s32.totalorder %s24, 0
      %p51 = por %p49, %p50
      %s53 = sadd.s32 %s52, 1
      %p56 = scmp.eq.s32.totalorder %s18, 1
      %p57 = scmp.ne.s32.totalorder %s52, %s54
      %p58 = scmp.eq.s32.totalorder %s18, 0
      %p59 = por %p57, %p58
      %p60 = scmp.ne.s32.totalorder %s52, %s54
      %p61 = scmp.eq.s32.totalorder %s23, 1
      %p62 = por %p60, %p61
      %p63 = scmp.ne.s32.totalorder %s54, %s55
      %p64 = scmp.eq.s32.totalorder %s23, 0
      %p65 = por %p63, %p64
      %p66 = scmp.ne.s32.totalorder %s54, %s55
      %p67 = scmp.eq.s32.totalorder %s24, 1
      %p68 = por %p66, %p67
      %p70 = scmp.ne.s32.totalorder %s55, %s69
      %p71 = scmp.eq.s32.totalorder %s24, 0
      %p72 = por %p70, %p71
      %s74 = sadd.s32 %s73, 1
      %p77 = scmp.eq.s32.totalorder %s18, 1
      %p78 = scmp.ne.s32.totalorder %s73, %s75
      %p79 = scmp.eq.s32.totalorder %s18, 0
      %p80 = por %p78, %p79
      %p81 = scmp.ne.s32.totalorder %s73, %s75
      %p82 = scmp.eq.s32.totalorder %s23, 1
      %p83 = por %p81, %p82
      %p84 = scmp.ne.s32.totalorder %s75, %s76
      %p85 = scmp.eq.s32.totalorder %s23, 0
      %p86 = por %p84, %p85
      %p87 = scmp.ne.s32.totalorder %s75, %s76
      %p88 = scmp.eq.s32.totalorder %s24, 1
      %p89 = por %p87, %p88
      %p91 = scmp.ne.s32.totalorder %s76, %s90
      %p92 = scmp.eq.s32.totalorder %s24, 0
      %p93 = por %p91, %p92
      %s95 = sadd.s32 %s94, 1
      %p98 = scmp.eq.s32.totalorder %s18, 1
      %p99 = scmp.ne.s32.totalorder %s94, %s96
      %p100 = scmp.eq.s32.totalorder %s18, 0
      %p101 = por %p99, %p100
      %p102 = scmp.ne.s32.totalorder %s94, %s96
      %p103 = scmp.eq.s32.totalorder %s23, 1
      %p104 = por %p102, %p103
      %p105 = scmp.ne.s32.totalorder %s96, %s97
      %p106 = scmp.eq.s32.totalorder %s23, 0
      %p107 = por %p105, %p106
      %p108 = scmp.ne.s32.totalorder %s96, %s97
      %p109 = scmp.eq.s32.totalorder %s24, 1
      %p110 = por %p108, %p109
      %p112 = scmp.ne.s32.totalorder %s97, %s111
      %p113 = scmp.eq.s32.totalorder %s24, 0
      %p114 = por %p112, %p113
      %s116 = sadd.s32 %s115, 1
      %p119 = scmp.eq.s32.totalorder %s18, 1
      %p120 = scmp.ne.s32.totalorder %s115, %s117
      %p121 = scmp.eq.s32.totalorder %s18, 0
      %p122 = por %p120, %p121
      %p123 = scmp.ne.s32.totalorder %s115, %s117
      %p124 = scmp.eq.s32.totalorder %s23, 1
      %p125 = por %p123, %p124
      %p126 = scmp.ne.s32.totalorder %s117, %s118
      %p127 = scmp.eq.s32.totalorder %s23, 0
      %p128 = por %p126, %p127
      %p129 = scmp.ne.s32.totalorder %s117, %s118
      %p130 = scmp.eq.s32.totalorder %s24, 1
      %p131 = por %p129, %p130
      %p133 = scmp.ne.s32.totalorder %s118, %s132
      %p134 = scmp.eq.s32.totalorder %s24, 0
      %p135 = por %p133, %p134
      %s136 = ssub.s32 %s18, %s25
      %p137 = scmp.eq.s32.totalorder %s136, 0
      %s139 = sadd.s32 %s138, 1
      %s140 = scalar_select %p137, %s138, %s139
      %p143 = pneg %p137
      %p144 = scmp.eq.s32.totalorder %s18, 1
      %p145 = por %p143, %p144
      %p146 = scmp.ne.s32.totalorder %s138, %s141
      %p147 = scmp.eq.s32.totalorder %s18, 0
      %p148 = por %p146, %p147
      %p149 = scmp.ne.s32.totalorder %s138, %s141
      %p150 = scmp.eq.s32.totalorder %s23, 1
      %p151 = por %p149, %p150
      %p152 = scmp.ne.s32.totalorder %s141, %s142
      %p153 = scmp.eq.s32.totalorder %s23, 0
      %p154 = por %p152, %p153
      %p155 = scmp.ne.s32.totalorder %s141, %s142
      %p156 = scmp.eq.s32.totalorder %s24, 1
      %p157 = por %p155, %p156
      %p159 = scmp.ne.s32.totalorder %s142, %s158
      %p160 = scmp.eq.s32.totalorder %s24, 0
      %p161 = por %p159, %p160
      %p162 = scmp.le.s32.totalorder 1, %s18
      %p163 = scmp.lt.s32.totalorder %s18, 3
      %p164 = pnand %p162, %p163
      %p165 = pneg %p164
      // Predicated region
      $region9: #{tpu_custom_call.1} parent=5 // pred_check
        _
      $region10: #{tpu_custom_call.1} parent=5 // pred_check_branch
        %167 = sbr.rel (%p164) target = $region12
      $region11: #{tpu_custom_call.1} parent=5 // pred_region
        %s168 = ssub.s32 %s18, 1
        // Predicated region
        $region13: #{tpu_custom_call.1} parent=11 // pred_check
          %p169 = pneg %p65
        $region14: #{tpu_custom_call.1} parent=11 // pred_check_branch
          %171 = sbr.rel (%p169) target = $region16
        $region15: #{tpu_custom_call.1} parent=11 // pred_region
          %173 = vsyncadd [#allocation6], 0
          %s174 = sshll.u32 %s1, 4
          %s175 = int_to_ptr.hbm [resolvable:$true] %s174
          %s176 = sshll.u32 [#allocation5], 4
          %s177 = int_to_ptr.vmem [resolvable:$true] %s176
          %182 = dma.hbm_to_vmem [thread:$0]  %s175, 2048, %s177, [#allocation6], 128, 128, 8
        $region16: #{tpu_custom_call.1} parent=11 // pred_fallthru
          _
        // Predicated region
        $region17: #{tpu_custom_call.1} parent=11 // pred_check
          %p183 = pneg %p86
        $region18: #{tpu_custom_call.1} parent=11 // pred_check_branch
          %185 = sbr.rel (%p183) target = $region20
        $region19: #{tpu_custom_call.1} parent=11 // pred_region
          _
        $region20: #{tpu_custom_call.1} parent=11 // pred_fallthru
          _
        // Predicated region
        $region21: #{tpu_custom_call.1} parent=11 // pred_check
          %p186 = pneg %p107
        $region22: #{tpu_custom_call.1} parent=11 // pred_check_branch
          %188 = sbr.rel (%p186) target = $region24
        $region23: #{tpu_custom_call.1} parent=11 // pred_region
          _
        $region24: #{tpu_custom_call.1} parent=11 // pred_fallthru
          _
        // Predicated region
        $region25: #{tpu_custom_call.1} parent=11 // pred_check
          %p189 = pneg %p128
        $region26: #{tpu_custom_call.1} parent=11 // pred_check_branch
          %191 = sbr.rel (%p189) target = $region28
        $region27: #{tpu_custom_call.1} parent=11 // pred_region
          _
        $region28: #{tpu_custom_call.1} parent=11 // pred_fallthru
          _
      $region12: #{tpu_custom_call.1} parent=5 // pred_fallthru
        _
      %p192 = scmp.lt.s32.totalorder %s18, 2
      // Predicated region
      $region29: #{tpu_custom_call.1} parent=5 // pred_check
        %p193 = pneg %p192
      $region30: #{tpu_custom_call.1} parent=5 // pred_check_branch
        %195 = sbr.rel (%p193) target = $region32
      $region31: #{tpu_custom_call.1} parent=5 // pred_region
        // Predicated region
        $region33: #{tpu_custom_call.1} parent=31 // pred_check
          %p196 = pneg %p38
        $region34: #{tpu_custom_call.1} parent=31 // pred_check_branch
          %198 = sbr.rel (%p196) target = $region36
        $region35: #{tpu_custom_call.1} parent=31 // pred_region
          %s199 = sand.u32 %s28, 1
          %s200 = scalar_lea.sflag [#allocation3], %s199
          %s201 = sand.u32 %s28, 1
          %s202 = smul.addr %s201, 8
          %s203 = scalar_lea.vmem [#allocation2], %s202
          %205 = vsyncadd %s200, 0
          %s206 = smul.addr %s18, 8
          %s207 = scalar_lea.hbm %s0, %s206
          %s209 = sshll.u32 %s207, 4
          %s210 = int_to_ptr.hbm [resolvable:$true] %s209
          %s211 = sshll.u32 %s203, 4
          %s212 = int_to_ptr.vmem [resolvable:$true] %s211
          %214 = dma.hbm_to_vmem [thread:$0]  %s210, 128, %s212, %s200
        $region36: #{tpu_custom_call.1} parent=31 // pred_fallthru
          _
      $region32: #{tpu_custom_call.1} parent=5 // pred_fallthru
        _
      %p215 = scmp.le.s32.totalorder 1, %s18
      %p216 = scmp.lt.s32.totalorder %s18, 3
      %p217 = pnand %p215, %p216
      %p218 = pneg %p217
      // Predicated region
      $region37: #{tpu_custom_call.1} parent=5 // pred_check
        _
      $region38: #{tpu_custom_call.1} parent=5 // pred_check_branch
        %220 = sbr.rel (%p217) target = $region40
      $region39: #{tpu_custom_call.1} parent=5 // pred_region
        %s221 = ssub.s32 %s18, 1
        %s222 = sand.u32 %s31, 1
        %s223 = scalar_lea.sflag [#allocation3], %s222
        %s224 = sand.u32 %s31, 1
        %s225 = smul.addr %s224, 8
        %s226 = scalar_lea.vmem [#allocation2], %s225
        // Predicated region
        $region41: #{tpu_custom_call.1} parent=39 // pred_check
          %p227 = pneg %p44
        $region42: #{tpu_custom_call.1} parent=39 // pred_check_branch
          %229 = sbr.rel (%p227) target = $region44
        $region43: #{tpu_custom_call.1} parent=39 // pred_region
          %231 = dma.done %s223, 128
        $region44: #{tpu_custom_call.1} parent=39 // pred_fallthru
          _
        // Predicated region
        $region45: #{tpu_custom_call.1} parent=39 // pred_check
          %p232 = pneg %p65
        $region46: #{tpu_custom_call.1} parent=39 // pred_check_branch
          %234 = sbr.rel (%p232) target = $region48
        $region47: #{tpu_custom_call.1} parent=39 // pred_region
          %236 = dma.done [#allocation6], 2048
        $region48: #{tpu_custom_call.1} parent=39 // pred_fallthru
          _
        %s237 = sand.u32 %s31, 1
        %s238 = scalar_lea.sflag [#allocation3], %s237
        %s239 = sand.u32 %s31, 1
        %s240 = smul.addr %s239, 8
        %s241 = scalar_lea.vmem [#allocation2], %s240
        %p242 = pneg %p44
        %p243 = pneg %p41
        %p244 = pneg %p65
        %p245 = pneg %p62
        %p246 = pneg %p86
        %p247 = pneg %p83
        %p248 = pneg %p107
        %p249 = pneg %p104
        %p250 = pneg %p128
        %p251 = pneg %p125
        %p252 = pneg %p154
        %p253 = pneg %p151
        %s254 = sand.u32 %s141, 1
        %s255 = scalar_lea.sflag [#allocation4], %s254
        %s256 = sand.u32 %s141, 1
        %s257 = smul.addr %s256, 8
        %s258 = scalar_lea.vmem [#allocation7], %s257
        %v259 = vld [vmem:[%s226] sm:$0xff]
        %v260 = vld [vmem:[#allocation5] sm:$0xff]
        %v261 = vld [vmem:[#allocation5 + $0x8] sm:$0xff]
        %v262 = vld [vmem:[#allocation5 + $0x10] sm:$0xff]
        %v263 = vld [vmem:[#allocation5 + $0x18] sm:$0xff]
        %v264 = vld [vmem:[#allocation5 + $0x20] sm:$0xff]
        %v265 = vld [vmem:[#allocation5 + $0x28] sm:$0xff]
        %v266 = vld [vmem:[#allocation5 + $0x30] sm:$0xff]
        %v267 = vld [vmem:[#allocation5 + $0x38] sm:$0xff]
        %v268 = vld [vmem:[#allocation5 + $0x40] sm:$0xff]
        %v269 = vld [vmem:[#allocation5 + $0x48] sm:$0xff]
        %v270 = vld [vmem:[#allocation5 + $0x50] sm:$0xff]
        %v271 = vld [vmem:[#allocation5 + $0x58] sm:$0xff]
        %v272 = vld [vmem:[#allocation5 + $0x60] sm:$0xff]
        %v273 = vld [vmem:[#allocation5 + $0x68] sm:$0xff]
        %v274 = vld [vmem:[#allocation5 + $0x70] sm:$0xff]
        %v275 = vld [vmem:[#allocation5 + $0x78] sm:$0xff]
        %v276 = vld [vmem:[%s2] sm:$0x1]
        %v277 = vld [vmem:[%s3] sm:$0x1]
        %v278 = vld [vmem:[%s4] sm:$0x1]
        %v280 = vperm.slane %v276, 0
        %282 = vmatpush.msra.mxu0 %v275
        %283 = vmatpush.msra.mxu0 %v274
        %284 = vmatpush.msra.mxu0 %v273
        %285 = vmatpush.msra.mxu0 %v272
        %286 = vmatpush.msra.mxu0 %v271
        %287 = vmatpush.msra.mxu0 %v270
        %288 = vmatpush.msra.mxu0 %v269
        %289 = vmatpush.msra.mxu0 %v268
        %290 = vmatpush.msra.mxu0 %v267
        %291 = vmatpush.msra.mxu0 %v266
        %292 = vmatpush.msra.mxu0 %v265
        %293 = vmatpush.msra.mxu0 %v264
        %294 = vmatpush.msra.mxu0 %v263
        %295 = vmatpush.msra.mxu0 %v262
        %296 = vmatpush.msra.mxu0 %v261
        %297 = vmatpush.msra.mxu0 %v260
        %298 = vmatmul.f32.gmra.mxu0 %v259
        %v299 = vpop.f32.mrf.mxu0
        %v300 = vadd.f32 %v280, %v299
        %301 = vdwg.mxu0
        %v302 = vmul.f32 %v300, 0.071357526
        %v303 = vmul.f32 %v302, %v300
        %v304 = vadd.f32 %v303, 1.5957692
        %v305 = vmul.f32 %v300, %v304
        %v306 = vxor.u32 %v305, 2147483648
        %v307 = vmul.f32 %v306, 1.442695
        %v308 = vpow.pop %v307
        %v309 = vadd.f32 %v308, 1.0
        %v310 = vrcp.pop %v309
        %v311 = vmul.f32 %v309, %v310
        %v312 = vsub.f32 1.0, %v311
        %v313 = vmul.f32 %v310, %v312
        %v314 = vadd.f32 %v310, %v313
        %vm315 = vweird.f32 %v309
        %vm316 = vweird.f32 %v310
        %vm317 = vmor %vm315, %vm316
        %v318 = vsel %vm317, %v310, %v314
        %v319 = vand.u32 2147483647, %v309
        %vm320 = vcmp.eq.f32.partialorder %v319, 8.507059e+37
        %v321 = vand.u32 %v309, 2147483648
        %v322 = vor.u32 1.1754944e-38, %v321
        %v323 = vsel %vm320, %v322, %v318
        %v324 = vmul.f32 1.0, %v323
        %v325 = vmul.f32 %v300, %v324
        %326 = vadd.xlane.f32.xlu0 %v325
        %v327 = vpop.xlane.xlu0 %326
        %v328 = vmul.f32 %v327, 0.03125
        %v329 = vsub.f32 %v325, %v328
        %v330 = vlaneseq
        %v331 = vand.u32 %v330, 127
        %vm332 = vcmp.lt.s32.totalorder %v331, 32
        %v333 = vsel %vm332, 1, 0
        %vm334 = vcmp.eq.s32.totalorder %v333, 1
        %v335 = vsel %vm334, %v329, 0.0
        %v336 = vmul.f32 %v335, %v335
        %337 = vadd.xlane.f32.xlu0 %v336
        %v338 = vpop.xlane.xlu0 %337
        %v339 = vmul.f32 %v338, 0.03125
        %v340 = vadd.f32 %v339, 1e-12
        %v341 = vrsqrt.pop %v340
        %v342 = vmul.f32 %v341, %v340
        %v343 = vmul.f32 %v342, %v341
        %v344 = vmul.f32 0.5, %v343
        %v345 = vsub.f32 1.5, %v344
        %v346 = vmul.f32 %v341, %v345
        %vm347 = vweird.f32 %v340
        %vm348 = vweird.f32 %v341
        %vm349 = vmor %vm347, %vm348
        %v350 = vsel %vm349, %v341, %v346
        %v351 = vmul.f32 %v335, %v350
        %v353 = vperm.slane %v277, 0
        %v355 = vmul.f32 %v351, %v353
        %v357 = vperm.slane %v278, 0
        %v359 = vadd.f32 %v355, %v357
        %360 = vst [vmem:[%s258] sm:$0xff] %v359
        %s361 = sand.u32 %s141, 1
        %s362 = scalar_lea.sflag [#allocation4], %s361
        %s363 = sand.u32 %s141, 1
        %s364 = smul.addr %s363, 8
        %s365 = scalar_lea.vmem [#allocation7], %s364
        // Predicated region
        $region49: #{tpu_custom_call.1} parent=39 // pred_check
          %p366 = pneg %p151
        $region50: #{tpu_custom_call.1} parent=39 // pred_check_branch
          %368 = sbr.rel (%p366) target = $region52
        $region51: #{tpu_custom_call.1} parent=39 // pred_region
          %370 = vsyncadd %s362, 0
          %s371 = smul.addr %s23, 8
          %s372 = scalar_lea.hbm %s5, %s371
          %s374 = sshll.u32 %s365, 4
          %s375 = int_to_ptr.vmem [resolvable:$true] %s374
          %s376 = sshll.u32 %s372, 4
          %s377 = int_to_ptr.hbm [resolvable:$true] %s376
          %379 = dma.vmem_to_hbm [thread:$0]  %s375, 128, %s377, %s362
        $region52: #{tpu_custom_call.1} parent=39 // pred_fallthru
          _
      $region40: #{tpu_custom_call.1} parent=5 // pred_fallthru
        _
      %p380 = scmp.le.s32.totalorder 2, %s18
      // Predicated region
      $region53: #{tpu_custom_call.1} parent=5 // pred_check
        %p381 = pneg %p380
      $region54: #{tpu_custom_call.1} parent=5 // pred_check_branch
        %383 = sbr.rel (%p381) target = $region56
      $region55: #{tpu_custom_call.1} parent=5 // pred_region
        %s384 = ssub.s32 %s18, 2
        // Predicated region
        $region57: #{tpu_custom_call.1} parent=55 // pred_check
          %p385 = pneg %p157
        $region58: #{tpu_custom_call.1} parent=55 // pred_check_branch
          %387 = sbr.rel (%p385) target = $region60
        $region59: #{tpu_custom_call.1} parent=55 // pred_region
          %s388 = sand.u32 %s142, 1
          %s389 = scalar_lea.sflag [#allocation4], %s388
          %s390 = sand.u32 %s142, 1
          %s391 = smul.addr %s390, 8
          %s392 = scalar_lea.vmem [#allocation7], %s391
          %394 = dma.done %s389, 128
        $region60: #{tpu_custom_call.1} parent=55 // pred_fallthru
          _
      $region56: #{tpu_custom_call.1} parent=5 // pred_fallthru
        _
    $region6: #{tpu_custom_call.1} parent=1 // loop_footer
      %s22 = sadd.s32 1, %s18
    $region7: #{tpu_custom_call.1} parent=1 // loop_footer_branch
      %17 = sbr.rel target = $region3
    $region8: #{tpu_custom_call.1} parent=1 // loop_exit
      _
    %395 = vsyncpa [#allocation3], 1
    %s396 = scalar_lea.sflag [#allocation3], 1
    %397 = vsyncpa %s396, 1
    %398 = vsyncpa [#allocation6], 1
    %399 = vsyncpa [#allocation4], 1
    %s400 = scalar_lea.sflag [#allocation4], 1
    %401 = vsyncpa %s400, 1

</llo_original>
